<compile_context>
chip_gen: v6e
topology: v6e:2x2x1
jax: 0.10.0
libtpu: 0.0.40
codegen_flags: <defaults>
</compile_context>

<pallas_src>
import jax
import jax.numpy as jnp
from jax.experimental import pallas as pl
from jax.experimental.pallas import tpu as pltpu

_SUBLANE = 8
_LANE = 128
_TARGET_BLOCK_BYTES = 2 * 1024 * 1024   # ~2 MiB per block buffer


def _offset_kernel(scale_ref, x_ref, o_ref):
    # scale_ref: (1,) f32 in SMEM; x_ref/o_ref: (TR, C) VMEM tiles.
    s = scale_ref[0]                                        # hoisted scalar read
    o_ref[...] = (x_ref[...].astype(jnp.float32) + s).astype(o_ref.dtype)


def _pick_lanes(n):
    """Largest lane width (multiple of 128) dividing n; else 128 + padding."""
    for c in (1024, 512, 256, 128):
        if n % c == 0:
            return c, False
    return _LANE, True


@jax.jit
def offset_forward(x, scale):
    """y = x + scale via a Pallas TPU kernel. Works for any shape/dtype."""
    orig_shape = x.shape
    in_dtype = x.dtype
    # PyTorch promotion: floating tensors keep their dtype against the 0-dim
    # f32 parameter; integer/bool tensors promote to float.
    if jnp.issubdtype(in_dtype, jnp.floating):
        out_dtype = in_dtype
    else:
        out_dtype = jnp.result_type(in_dtype, jnp.float32)

    n = x.size
    xf = x.reshape(-1)
    lanes, need_pad = _pick_lanes(n)
    if need_pad:                                  # rare: only when n % 128 != 0
        n_pad = pl.cdiv(n, lanes) * lanes
        xf = jnp.pad(xf, (0, n_pad - n))
    else:
        n_pad = n
    rows = n_pad // lanes
    x2 = xf.reshape(rows, lanes)                  # metadata-only reshape when no pad

    itemsize = max(x2.dtype.itemsize, jnp.dtype(out_dtype).itemsize)
    tr = max(_SUBLANE,
             (_TARGET_BLOCK_BYTES // (lanes * itemsize)) // _SUBLANE * _SUBLANE)
    if rows <= tr:
        tr = rows                                 # block == full dim: always legal
    grid = (pl.cdiv(rows, tr),)                   # partial last block handled by Pallas

    scale_arr = jnp.asarray(scale, dtype=jnp.float32).reshape(1)

    out2 = pl.pallas_call(
        _offset_kernel,
        out_shape=jax.ShapeDtypeStruct((rows, lanes), out_dtype),
        grid=grid,
        in_specs=[
            pl.BlockSpec(memory_space=pltpu.MemorySpace.SMEM),   # scale scalar
            pl.BlockSpec((tr, lanes), lambda i: (i, 0)),          # x tile
        ],
        out_specs=pl.BlockSpec((tr, lanes), lambda i: (i, 0)),
        compiler_params=pltpu.CompilerParams(
            dimension_semantics=("parallel",),
            vmem_limit_bytes=32 * 1024 * 1024,
        ),
    )(scale_arr, x2)

    out = out2.reshape(-1)
    if need_pad:
        out = out[:n]
    return out.reshape(orig_shape)


class OffsetPallas:
    """JAX/Pallas port of mmdet3d Offset (learnable additive scalar)."""

    def __init__(self, scale: float = 1.0):
        # matches nn.Parameter(torch.tensor(scale, dtype=torch.float))
        self.scale = jnp.asarray(scale, dtype=jnp.float32)

    def __call__(self, x):
        return offset_forward(x, self.scale)


if __name__ == "__main__":
    key = jax.random.PRNGKey(0)
    x = jax.random.normal(key, (2, 4, 16, 16), dtype=jnp.float32)  # NCHW

    module = OffsetPallas(scale=1.0)
    y = jax.block_until_ready(module(x))

    # f32 correctness check
    ref = x + module.scale
    assert y.shape == x.shape and y.dtype == x.dtype
    assert jnp.allclose(y, ref, atol=1e-6, rtol=1e-6)

    # bf16 path: native-dtype HBM traffic, add in f32 inside the kernel
    xb = jax.random.normal(jax.random.PRNGKey(1), (2, 4, 16, 16)).astype(jnp.bfloat16)
    yb = jax.block_until_ready(module(xb))
    refb = (xb.astype(jnp.float32) + module.scale).astype(jnp.bfloat16)
    assert yb.dtype == jnp.bfloat16 and jnp.array_equal(yb, refb)

    # non-128-divisible element count: exercises the (rare) pad fallback
    xo = jax.random.normal(jax.random.PRNGKey(2), (3, 5, 7, 11), dtype=jnp.float32)
    yo = jax.block_until_ready(module(xo))
    assert yo.shape == xo.shape
    assert jnp.allclose(yo, xo + module.scale, atol=1e-6, rtol=1e-6)

    print("KERNEL_OK")
</pallas_src>

<mosaic_0001>
module attributes {stable_mosaic.version = 11 : i64} {
  func.func @_offset_kernel(%arg0: i32, %arg1: memref<1xf32, #tpu.memory_space<smem>>, %arg2: memref<2x1024xf32, #tpu.memory_space<vmem>>, %arg3: memref<2x1024xf32, #tpu.memory_space<vmem>>) attributes {dimension_semantics = [#tpu.dimension_semantics<parallel>], iteration_bounds = array<i64: 1>, scalar_prefetch = 0 : i64, scratch_operands = 0 : i64, tpu.core_type = #tpu.core_type<tc>, window_params = [{transform_indices = @transform_0, window_bounds = array<i64: 1>}, {transform_indices = @transform_1, window_bounds = array<i64: 2, 1024>}, {transform_indices = @transform_2, window_bounds = array<i64: 2, 1024>}]} {
    %c0 = arith.constant 0 : index
    %0 = memref.load %arg1[%c0] : memref<1xf32, #tpu.memory_space<smem>>
    %c0_0 = arith.constant 0 : index
    %c0_1 = arith.constant 0 : index
    %1 = vector.load %arg2[%c0_0, %c0_1] : memref<2x1024xf32, #tpu.memory_space<vmem>>, vector<2x1024xf32>
    %2 = vector.broadcast %0 : f32 to vector<2x1024xf32>
    %3 = arith.addf %1, %2 : vector<2x1024xf32>
    %c0_2 = arith.constant 0 : index
    %c0_3 = arith.constant 0 : index
    %4 = vector.load %arg3[%c0_2, %c0_3] : memref<2x1024xf32, #tpu.memory_space<vmem>>, vector<2x1024xf32>
    tpu.vector_store %arg3[%c0_2, %c0_3], %3 {strides = array<i32>} : memref<2x1024xf32, #tpu.memory_space<vmem>>, vector<2x1024xf32>,
    return
  }
  func.func @transform_0(%arg0: i32) -> i32 {
    %c0_i32 = arith.constant 0 : i32
    %c0_i32_0 = arith.constant 0 : i32
    return %c0_i32 : i32
  }
  func.func @transform_1(%arg0: i32) -> (i32, i32) {
    %c0_i32 = arith.constant 0 : i32
    %c0_i32_0 = arith.constant 0 : i32
    return %arg0, %c0_i32 : i32, i32
  }
  func.func @transform_2(%arg0: i32) -> (i32, i32) {
    %c0_i32 = arith.constant 0 : i32
    %c0_i32_0 = arith.constant 0 : i32
    return %arg0, %c0_i32 : i32, i32
  }
}

</mosaic_0001>

<llo_original>
// kernel: offset_forward.1
$region0: #{offset_forward.1}
  #allocation0 [shape = 'u32[]', space=smem, size = 0x4, offset = 0x4, fixed_abs, tag = 'smem constant byte address 0x4 - core index']
  #allocation1 [shape = 'u32[144,128]{1,0:T(1,128)}', space=vmem, size = 0x12000, scoped, tag = 'internal scratch']
  #allocation2 [shape = 'f32[1]{0:T(128)S(6)}', space=smem, size = 0x200, scoped, tag = 'scoped memory for offset_forward.1']
  %s0 = inlined_call_operand.<no memory space> [shape: f32[1], index: 0, kind: input, shape index: {}]
  %s1 = inlined_call_operand.vmem [shape: f32[2,1024], index: 1, kind: input, shape index: {}]
  %s2 = inlined_call_operand.vmem [shape: f32[2,1024], index: 2, kind: output, shape index: {}]
  %s3 = sld [smem:[#allocation0]]
  $region18: #{offset_forward.1} parent=0
    _
  %s5 = ssub.s32 1, %s3
  %s6 = scalar_select 0, %s5, %s3
  %7 = sst [smem:[#allocation2]] %s0
  // Predicated region
  $region2: #{offset_forward.1} parent=0 // pred_check
    _
  $region3: #{offset_forward.1} parent=0 // pred_check_branch
    %9 = sbr.rel (0) target = $region5
  $region4: #{offset_forward.1} parent=0 // pred_region
    _
  $region5: #{offset_forward.1} parent=0 // pred_fallthru
    _
  // Predicated region
  $region6: #{offset_forward.1} parent=0 // pred_check
    _
  $region7: #{offset_forward.1} parent=0 // pred_check_branch
    %11 = sbr.rel (0) target = $region9
  $region8: #{offset_forward.1} parent=0 // pred_region
    _
  $region9: #{offset_forward.1} parent=0 // pred_fallthru
    _
  %s12 = sld [smem:[#allocation2]]
  %v13 = vld [vmem:[%s1] sm:$0xff]
  %v14 = vld [vmem:[%s1 + $0x8] sm:$0xff]
  %v15 = vstv %s12
  %v16 = vadd.f32 %v13, %v15
  %v17 = vadd.f32 %v14, %v15
  %18 = vst [vmem:[%s2] sm:$0xff] %v16
  %19 = vst [vmem:[%s2 + $0x8] sm:$0xff] %v17
  // Predicated region
  $region10: #{offset_forward.1} parent=0 // pred_check
    _
  $region11: #{offset_forward.1} parent=0 // pred_check_branch
    %21 = sbr.rel (0) target = $region13
  $region12: #{offset_forward.1} parent=0 // pred_region
    _
  $region13: #{offset_forward.1} parent=0 // pred_fallthru
    _
  // Predicated region
  $region14: #{offset_forward.1} parent=0 // pred_check
    _
  $region15: #{offset_forward.1} parent=0 // pred_check_branch
    %23 = sbr.rel (0) target = $region17
  $region16: #{offset_forward.1} parent=0 // pred_region
    _
  $region17: #{offset_forward.1} parent=0 // pred_fallthru
    _

</llo_original>
